<compile_context>
chip_gen: v6e
topology: v6e:2x2x1
jax: 0.10.0
libtpu: 0.0.40
codegen_flags: <defaults>
</compile_context>

<pallas_src>
import jax
import jax.numpy as jnp
from jax import lax
from jax.experimental import pallas as pl
from jax.experimental.pallas import tpu as pltpu


LANE = 128          # TPU lane width; channel dims are padded to a multiple of this.
_BN_EPS = 1e-5


# ----------------------------------------------------------------------------
# small helpers
# ----------------------------------------------------------------------------
def _round_up(x, m):
    return ((x + m - 1) // m) * m


def _pad_last(a, target):
    pad = target - a.shape[-1]
    if pad == 0:
        return a
    widths = [(0, 0)] * (a.ndim - 1) + [(0, pad)]
    return jnp.pad(a, widths)


def _pick_tile(m):
    # Modest row tiles keep (x tile + weight + f32 acc) within the default scoped
    # VMEM budget on every generation (incl. v7x's 64 MiB physical VMEM).
    for t in (256, 128, 64, 32, 16, 8):
        if m % t == 0:
            return t
    return m   # full-array fallback (only hit at toy shapes)


def _bn_affine(col_sum, col_sq, m, gamma, beta, eps=_BN_EPS):
    """Fold batch stats (training-mode BN, biased variance like PyTorch) into a
    per-channel scale/bias.  NOTE: single-pass E[x^2]-E[x]^2 in f32; clamped at 0
    to guard against cancellation for near-constant channels."""
    mean = col_sum / m
    var = jnp.maximum(col_sq / m - mean * mean, 0.0)
    scale = gamma / jnp.sqrt(var + eps)
    bias = beta - mean * scale
    return scale, bias


# ----------------------------------------------------------------------------
# kernel 1: fused (optional input-BN+ReLU) -> matmul -> output stats epilogue
#           used for conv1, conv3 and the projection shortcut (all 1x1 convs)
# ----------------------------------------------------------------------------
def _make_mm_kernel(has_in_bn):
    def kernel(x_ref, w_ref, *rest):
        if has_in_bn:
            s_ref, b_ref, o_ref, sum_ref, sq_ref = rest
        else:
            o_ref, sum_ref, sq_ref = rest

        x = x_ref[...]
        if has_in_bn:
            # BN+ReLU of the previous layer, fused on the input side (f32 math).
            xf = jnp.maximum(x.astype(jnp.float32) * s_ref[...] + b_ref[...], 0.0)
            x = xf.astype(jnp.bfloat16)

        acc = jnp.dot(x, w_ref[...], preferred_element_type=jnp.float32)
        o_ref[...] = acc.astype(o_ref.dtype)

        # per-channel stats epilogue (accumulator outputs, resident across the grid)
        @pl.when(pl.program_id(0) == 0)
        def _():
            sum_ref[...] = jnp.zeros_like(sum_ref)
            sq_ref[...] = jnp.zeros_like(sq_ref)

        sum_ref[...] += jnp.sum(acc, axis=0, keepdims=True)
        sq_ref[...] += jnp.sum(acc * acc, axis=0, keepdims=True)

    return kernel


def matmul_stats(x, w, in_scale=None, in_bias=None, out_dtype=jnp.bfloat16):
    """(M, K) @ (K, C) in bf16 on the MXU (f32 accum) + fused per-channel
    sum / sum-of-squares of the output.  Optionally applies relu(x*s+b) to the
    input tile first (fused BN of the producing layer)."""
    M, K = x.shape
    _, C = w.shape
    tm = _pick_tile(M)
    has_in_bn = in_scale is not None

    row = pl.BlockSpec((tm, K), lambda i: (i, 0))
    wsp = pl.BlockSpec((K, C), lambda i: (0, 0))
    chan_in = pl.BlockSpec((1, K), lambda i: (0, 0))
    chan_out = pl.BlockSpec((1, C), lambda i: (0, 0))

    in_specs = [row, wsp]
    args = [x, w]
    if has_in_bn:
        in_specs += [chan_in, chan_in]
        args += [in_scale, in_bias]

    out_shape = (jax.ShapeDtypeStruct((M, C), out_dtype),
                 jax.ShapeDtypeStruct((1, C), jnp.float32),
                 jax.ShapeDtypeStruct((1, C), jnp.float32))
    out_specs = (pl.BlockSpec((tm, C), lambda i: (i, 0)), chan_out, chan_out)

    return pl.pallas_call(
        _make_mm_kernel(has_in_bn),
        out_shape=out_shape,
        grid=(M // tm,),
        in_specs=in_specs,
        out_specs=out_specs,
        # stats outputs are revisited along the row axis -> must be "arbitrary"
        compiler_params=pltpu.CompilerParams(dimension_semantics=("arbitrary",)),
    )(*args)


# ----------------------------------------------------------------------------
# kernel 2: conv2 (3x3, stride, pad=1) with fused bn1+relu on the input rows,
#           no materialized im2col, and fused bn2-stats epilogue.
# ----------------------------------------------------------------------------
def _make_conv2_kernel(stride, Hp, Wp, Wo, C):
    n_row_refs = 3 * stride

    def kernel(*refs):
        rows = refs[:n_row_refs]
        s_ref, b_ref, w_ref, o_ref, sum_ref, sq_ref = refs[n_row_refs:]

        n = pl.program_id(0)
        ho = pl.program_id(1)
        scale = s_ref[...]
        bias = b_ref[...]
        col = lax.broadcasted_iota(jnp.int32, (Wo, 1), 0)

        acc = jnp.zeros((Wo, C), jnp.float32)
        for kh in range(3):
            row_idx = ho * stride + kh                    # row in the padded tensor
            row_ok = jnp.logical_and(row_idx > 0, row_idx < Hp - 1)
            for kw in range(3):
                p = kw % stride                           # column phase
                q = kw // stride                          # offset inside the phase
                xr = rows[kh * stride + p]                # (phase_len, C) bf16
                win = xr[pl.ds(q, Wo), :].astype(jnp.float32)
                # fused BN1 + ReLU on the gathered window
                y = jnp.maximum(win * scale + bias, 0.0)
                # zero out spatial zero-padding positions (BN maps 0 -> relu(bias) != 0)
                ok = col >= 0
                if kw == 0:                               # window touches padded col 0
                    ok = jnp.logical_and(ok, col > 0)
                if kw + (Wo - 1) * stride == Wp - 1:      # window touches padded last col
                    ok = jnp.logical_and(ok, col < Wo - 1)
                y = jnp.where(jnp.logical_and(ok, row_ok), y, 0.0)
                acc = acc + jnp.dot(y.astype(jnp.bfloat16), w_ref[kh * 3 + kw],
                                    preferred_element_type=jnp.float32)

        o_ref[...] = acc.astype(o_ref.dtype)

        @pl.when(jnp.logical_and(n == 0, ho == 0))
        def _():
            sum_ref[...] = jnp.zeros_like(sum_ref)
            sq_ref[...] = jnp.zeros_like(sq_ref)

        sum_ref[...] += jnp.sum(acc, axis=0, keepdims=True)
        sq_ref[...] += jnp.sum(acc * acc, axis=0, keepdims=True)

    return kernel


def conv2_3x3_fused(y1p, scale1, bias1, w2, stride):
    """y1p: (N, H+2, W+2, C) bf16, spatially zero-padded pre-BN conv1 output.
    Returns (y2 (N,Ho,Wo,C) bf16, column sum, column sum-of-squares)."""
    N, Hp, Wp, C = y1p.shape
    H, W = Hp - 2, Wp - 2
    Ho = (H - 1) // stride + 1
    Wo = (W - 1) // stride + 1

    # Column-phase decomposition so every 3x3 tap becomes a *contiguous* in-kernel
    # slice (no strided loads inside the kernel).  stride==1 -> single phase.
    if stride == 1:
        phases = [y1p]
    else:
        phases = [y1p[:, :, p::stride, :] for p in range(stride)]

    row_args, row_specs = [], []
    for kh in range(3):
        for p in range(stride):
            ph = phases[p]
            row_args.append(ph)
            row_specs.append(
                pl.BlockSpec((None, None, ph.shape[2], C),
                             lambda n, ho, kh=kh: (n, ho * stride + kh, 0, 0)))

    chan = pl.BlockSpec((1, C), lambda n, ho: (0, 0))
    w_spec = pl.BlockSpec((9, C, C), lambda n, ho: (0, 0, 0))

    return pl.pallas_call(
        _make_conv2_kernel(stride, Hp, Wp, Wo, C),
        out_shape=(jax.ShapeDtypeStruct((N, Ho, Wo, C), jnp.bfloat16),
                   jax.ShapeDtypeStruct((1, C), jnp.float32),
                   jax.ShapeDtypeStruct((1, C), jnp.float32)),
        grid=(N, Ho),
        in_specs=row_specs + [chan, chan, w_spec],
        out_specs=(pl.BlockSpec((None, None, Wo, C), lambda n, ho: (n, ho, 0, 0)),
                   chan, chan),
        compiler_params=pltpu.CompilerParams(
            dimension_semantics=("arbitrary", "arbitrary")),
    )(*row_args, scale1, bias1, w2)


# ----------------------------------------------------------------------------
# kernel 3: final fusion  out = relu( bn3(y3) + shortcut )
#           shortcut is either bn_s(ys) (projection) or the raw input (identity)
# ----------------------------------------------------------------------------
def _final_proj_kernel(y3_ref, s3_ref, b3_ref, ys_ref, ss_ref, bs_ref, o_ref):
    main = y3_ref[...].astype(jnp.float32) * s3_ref[...] + b3_ref[...]
    sc = ys_ref[...].astype(jnp.float32) * ss_ref[...] + bs_ref[...]
    o_ref[...] = jnp.maximum(main + sc, 0.0)


def _final_id_kernel(y3_ref, s3_ref, b3_ref, r_ref, o_ref):
    main = y3_ref[...].astype(jnp.float32) * s3_ref[...] + b3_ref[...]
    o_ref[...] = jnp.maximum(main + r_ref[...].astype(jnp.float32), 0.0)


def residual_fuse(y3, s3, b3, ys=None, ss=None, bs=None, res=None):
    M, C = y3.shape
    tm = _pick_tile(M)
    row = pl.BlockSpec((tm, C), lambda i: (i, 0))
    chan = pl.BlockSpec((1, C), lambda i: (0, 0))

    if ys is not None:
        kernel = _final_proj_kernel
        in_specs = [row, chan, chan, row, chan, chan]
        args = [y3, s3, b3, ys, ss, bs]
    else:
        kernel = _final_id_kernel
        in_specs = [row, chan, chan, row]
        args = [y3, s3, b3, res]

    return pl.pallas_call(
        kernel,
        out_shape=jax.ShapeDtypeStruct((M, C), jnp.float32),
        grid=(M // tm,),
        in_specs=in_specs,
        out_specs=row,
        compiler_params=pltpu.CompilerParams(dimension_semantics=("parallel",)),
    )(*args)


# ----------------------------------------------------------------------------
# Bottleneck forward (NCHW in / NCHW out, PyTorch semantics)
# ----------------------------------------------------------------------------
def bottleneck_forward(x_nchw, params, stride):
    x = jnp.transpose(x_nchw, (0, 2, 3, 1))               # NHWC, channels on lanes
    N, H, W, _ = x.shape
    cin_p = params["w1"].shape[0]
    cmid_p = params["w1"].shape[1]
    cout_p = params["w3"].shape[1]
    x = _pad_last(x, cin_p).astype(jnp.bfloat16)           # lane-pad + bf16 activations
    M1 = N * H * W

    # ---- conv1 (1x1); bn1 stats fused into the matmul epilogue ----
    y1, s1, q1 = matmul_stats(x.reshape(M1, cin_p), params["w1"])
    sc1, bi1 = _bn_affine(s1, q1, M1, params["g1"], params["b1"])

    # ---- conv2 (3x3, stride, pad=1); bn1+relu fused in-kernel, no im2col ----
    y1p = jnp.pad(y1.reshape(N, H, W, cmid_p), ((0, 0), (1, 1), (1, 1), (0, 0)))
    y2, s2, q2 = conv2_3x3_fused(y1p, sc1, bi1, params["w2"], stride)
    _, Ho, Wo, _ = y2.shape
    M2 = N * Ho * Wo
    sc2, bi2 = _bn_affine(s2, q2, M2, params["g2"], params["b2"])

    # ---- conv3 (1x1); bn2+relu fused on the input side, bn3 stats on output ----
    y3, s3, q3 = matmul_stats(y2.reshape(M2, cmid_p), params["w3"],
                              in_scale=sc2, in_bias=bi2)
    sc3, bi3 = _bn_affine(s3, q3, M2, params["g3"], params["b3"])

    # ---- shortcut + final fused bn3 / bn_s / add / relu ----
    if "ws" in params:
        xs = x[:, ::stride, ::stride, :].reshape(M2, cin_p)
        ys, ss, qs = matmul_stats(xs, params["ws"])
        scs, bis = _bn_affine(ss, qs, M2, params["gs"], params["bs"])
        out = residual_fuse(y3, sc3, bi3, ys=ys, ss=scs, bs=bis)
    else:
        assert stride == 1 and cin_p == cout_p, "identity shortcut shape mismatch"
        out = residual_fuse(y3, sc3, bi3, res=x.reshape(M2, cin_p))

    out = out.reshape(N, Ho, Wo, cout_p)[:, :, :, :params["out_planes"]]
    return jnp.transpose(out, (0, 3, 1, 2))                # back to NCHW


# ----------------------------------------------------------------------------
# parameter construction (PyTorch layouts, converted + lane-padded + bf16)
# ----------------------------------------------------------------------------
def _bn_param_pair(key, c_real, c_pad):
    kg, kb = jax.random.split(key)
    g = 1.0 + 0.1 * jax.random.normal(kg, (c_real,), jnp.float32)
    b = 0.1 * jax.random.normal(kb, (c_real,), jnp.float32)
    g_pad = jnp.zeros((1, c_pad), jnp.float32).at[0, :c_real].set(g)
    b_pad = jnp.zeros((1, c_pad), jnp.float32).at[0, :c_real].set(b)
    return (g_pad, b_pad), (g, b)


def make_params(key, in_planes, planes, stride, expansion=4):
    out_planes = expansion * planes
    cin_p = _round_up(in_planes, LANE)
    cmid_p = _round_up(planes, LANE)
    cout_p = _round_up(out_planes, LANE)
    ks = jax.random.split(key, 8)

    # PyTorch conv weight layout: (Cout, Cin, kh, kw)
    w1_t = jax.random.normal(ks[0], (planes, in_planes, 1, 1), jnp.float32) * 0.1
    w2_t = jax.random.normal(ks[1], (planes, planes, 3, 3), jnp.float32) * 0.1
    w3_t = jax.random.normal(ks[2], (out_planes, planes, 1, 1), jnp.float32) * 0.1

    (g1p, b1p), (g1, b1) = _bn_param_pair(ks[4], planes, cmid_p)
    (g2p, b2p), (g2, b2) = _bn_param_pair(ks[5], planes, cmid_p)
    (g3p, b3p), (g3, b3) = _bn_param_pair(ks[6], out_planes, cout_p)

    w1 = jnp.zeros((cin_p, cmid_p), jnp.float32).at[:in_planes, :planes].set(
        w1_t[:, :, 0, 0].T)
    w2 = jnp.zeros((9, cmid_p, cmid_p), jnp.float32).at[:, :planes, :planes].set(
        jnp.transpose(w2_t, (2, 3, 1, 0)).reshape(9, planes, planes))
    w3 = jnp.zeros((cmid_p, cout_p), jnp.float32).at[:planes, :out_planes].set(
        w3_t[:, :, 0, 0].T)

    kparams = {
        "w1": w1.astype(jnp.bfloat16),
        "w2": w2.astype(jnp.bfloat16),
        "w3": w3.astype(jnp.bfloat16),
        "g1": g1p, "b1": b1p, "g2": g2p, "b2": b2p, "g3": g3p, "b3": b3p,
        "out_planes": out_planes,
    }
    rparams = {
        "w1": jnp.transpose(w1_t, (2, 3, 1, 0)),
        "w2": jnp.transpose(w2_t, (2, 3, 1, 0)),
        "w3": jnp.transpose(w3_t, (2, 3, 1, 0)),
        "g1": g1, "b1": b1, "g2": g2, "b2": b2, "g3": g3, "b3": b3,
    }

    if stride != 1 or in_planes != out_planes:
        ws_t = jax.random.normal(ks[3], (out_planes, in_planes, 1, 1), jnp.float32) * 0.1
        (gsp, bsp), (gs, bs) = _bn_param_pair(ks[7], out_planes, cout_p)
        kparams["ws"] = jnp.zeros((cin_p, cout_p), jnp.float32).at[
            :in_planes, :out_planes].set(ws_t[:, :, 0, 0].T).astype(jnp.bfloat16)
        kparams["gs"], kparams["bs"] = gsp, bsp
        rparams["ws"] = jnp.transpose(ws_t, (2, 3, 1, 0))
        rparams["gs"], rparams["bs"] = gs, bs
    return kparams, rparams


# ----------------------------------------------------------------------------
# pure-JAX reference (f32, unpadded) for correctness checking
# ----------------------------------------------------------------------------
def _ref_bn(y, gamma, beta, eps=_BN_EPS):
    mean = y.mean(axis=(0, 1, 2))
    var = y.var(axis=(0, 1, 2))                      # biased, training-mode BN
    return (y - mean) / jnp.sqrt(var + eps) * gamma + beta


def reference_forward(x_nchw, rp, stride):
    x = jnp.transpose(x_nchw, (0, 2, 3, 1))
    dn = ("NHWC", "HWIO", "NHWC")
    y1 = lax.conv_general_dilated(x, rp["w1"], (1, 1), "VALID", dimension_numbers=dn)
    o1 = jnp.maximum(_ref_bn(y1, rp["g1"], rp["b1"]), 0.0)
    y2 = lax.conv_general_dilated(o1, rp["w2"], (stride, stride), ((1, 1), (1, 1)),
                                  dimension_numbers=dn)
    o2 = jnp.maximum(_ref_bn(y2, rp["g2"], rp["b2"]), 0.0)
    y3 = lax.conv_general_dilated(o2, rp["w3"], (1, 1), "VALID", dimension_numbers=dn)
    o3 = _ref_bn(y3, rp["g3"], rp["b3"])
    if "ws" in rp:
        ys = lax.conv_general_dilated(x, rp["ws"], (stride, stride), "VALID",
                                      dimension_numbers=dn)
        sc = _ref_bn(ys, rp["gs"], rp["bs"])
    else:
        sc = x
    out = jnp.maximum(o3 + sc, 0.0)
    return jnp.transpose(out, (0, 3, 1, 2))


# ----------------------------------------------------------------------------
if __name__ == "__main__":
    key = jax.random.PRNGKey(0)

    configs = [
        # (N, in_planes, planes, stride)  -- spatial 8x8
        (2, 16, 8, 2),   # projection shortcut (stride 2 + channel change)
        (2, 32, 8, 1),   # identity shortcut
    ]
    H = W = 8
    for idx, (N, in_planes, planes, stride) in enumerate(configs):
        key, kx, kp = jax.random.split(key, 3)
        x = jax.random.normal(kx, (N, in_planes, H, W), jnp.float32)   # NCHW like PyTorch
        kparams, rparams = make_params(kp, in_planes, planes, stride)

        out = bottleneck_forward(x, kparams, stride)
        out = jax.block_until_ready(out)

        Ho = (H - 1) // stride + 1
        expected_shape = (N, 4 * planes, Ho, Ho)
        assert out.shape == expected_shape, (out.shape, expected_shape)
        assert bool(jnp.all(out >= 0.0)), "final ReLU violated"

        ref = reference_forward(x, rparams, stride)
        err = float(jnp.max(jnp.abs(out - ref)))
        assert err < 0.2, f"config {idx}: max abs err vs reference = {err}"

    print("KERNEL_OK")
</pallas_src>

<mosaic_0001>
module attributes {stable_mosaic.version = 11 : i64} {
  func.func @kernel(%arg0: i32, %arg1: memref<128x128xbf16, #tpu.memory_space<vmem>>, %arg2: memref<128x128xbf16, #tpu.memory_space<vmem>>, %arg3: memref<128x128xbf16, #tpu.memory_space<vmem>>, %arg4: memref<1x128xf32, #tpu.memory_space<vmem>>, %arg5: memref<1x128xf32, #tpu.memory_space<vmem>>) attributes {dimension_semantics = [#tpu.dimension_semantics<arbitrary>], iteration_bounds = array<i64: 1>, scalar_prefetch = 0 : i64, scratch_operands = 0 : i64, tpu.core_type = #tpu.core_type<tc>, window_params = [{transform_indices = @transform_0, window_bounds = array<i64: 128, 128>}, {pipeline_mode = #tpu.pipeline_mode<synchronous>, transform_indices = @transform_1, window_bounds = array<i64: 128, 128>}, {transform_indices = @transform_2, window_bounds = array<i64: 128, 128>}, {pipeline_mode = #tpu.pipeline_mode<synchronous>, transform_indices = @transform_3, window_bounds = array<i64: 1, 128>}, {pipeline_mode = #tpu.pipeline_mode<synchronous>, transform_indices = @transform_4, window_bounds = array<i64: 1, 128>}]} {
    %c0 = arith.constant 0 : index
    %c0_0 = arith.constant 0 : index
    %0 = vector.load %arg1[%c0, %c0_0] : memref<128x128xbf16, #tpu.memory_space<vmem>>, vector<128x128xbf16>
    %c0_1 = arith.constant 0 : index
    %c0_2 = arith.constant 0 : index
    %1 = vector.load %arg2[%c0_1, %c0_2] : memref<128x128xbf16, #tpu.memory_space<vmem>>, vector<128x128xbf16>
    %cst = arith.constant dense<0.000000e+00> : vector<128x128xf32>
    %2 = tpu.matmul %0, %1, %cst {dimension_numbers = #tpu.dot_dimension_numbers<[1], [0], [0], [1], [0, 0, 1, 1], [], []>} : vector<128x128xbf16>, vector<128x128xbf16>, vector<128x128xf32> -> vector<128x128xf32>
    %3 = arith.truncf %2 : vector<128x128xf32> to vector<128x128xbf16>
    %c0_3 = arith.constant 0 : index
    %c0_4 = arith.constant 0 : index
    %4 = vector.load %arg3[%c0_3, %c0_4] : memref<128x128xbf16, #tpu.memory_space<vmem>>, vector<128x128xbf16>
    tpu.vector_store %arg3[%c0_3, %c0_4], %3 {strides = array<i32>} : memref<128x128xbf16, #tpu.memory_space<vmem>>, vector<128x128xbf16>,
    %c0_i32 = arith.constant 0 : i32
    %5 = arith.cmpi eq, %arg0, %c0_i32 : i32
    %6 = arith.extui %5 : i1 to i32
    %c0_i32_5 = arith.constant 0 : i32
    %7 = arith.cmpi ne, %6, %c0_i32_5 : i32
    scf.if %7 {
      %cst_16 = arith.constant 0.000000e+00 : f32
      %19 = vector.broadcast %cst_16 : f32 to vector<1x128xf32>
      %c0_17 = arith.constant 0 : index
      %c0_18 = arith.constant 0 : index
      %20 = vector.load %arg4[%c0_17, %c0_18] : memref<1x128xf32, #tpu.memory_space<vmem>>, vector<1x128xf32>
      tpu.vector_store %arg4[%c0_17, %c0_18], %19 {strides = array<i32>} : memref<1x128xf32, #tpu.memory_space<vmem>>, vector<1x128xf32>,
      %cst_19 = arith.constant 0.000000e+00 : f32
      %21 = vector.broadcast %cst_19 : f32 to vector<1x128xf32>
      %c0_20 = arith.constant 0 : index
      %c0_21 = arith.constant 0 : index
      %22 = vector.load %arg5[%c0_20, %c0_21] : memref<1x128xf32, #tpu.memory_space<vmem>>, vector<1x128xf32>
      tpu.vector_store %arg5[%c0_20, %c0_21], %21 {strides = array<i32>} : memref<1x128xf32, #tpu.memory_space<vmem>>, vector<1x128xf32>,
    } else {
    }
    %c0_6 = arith.constant 0 : index
    %c0_7 = arith.constant 0 : index
    %8 = vector.load %arg4[%c0_6, %c0_7] : memref<1x128xf32, #tpu.memory_space<vmem>>, vector<1x128xf32>
    %cst_8 = arith.constant dense<0.000000e+00> : vector<128xf32>
    %9 = vector.multi_reduction <add>, %2, %cst_8 [0] : vector<128x128xf32> to vector<128xf32>
    %10 = vector.shape_cast %9 : vector<128xf32> to vector<1x128xf32>
    %11 = arith.addf %8, %10 : vector<1x128xf32>
    %c0_9 = arith.constant 0 : index
    %c0_10 = arith.constant 0 : index
    %12 = vector.load %arg4[%c0_9, %c0_10] : memref<1x128xf32, #tpu.memory_space<vmem>>, vector<1x128xf32>
    tpu.vector_store %arg4[%c0_9, %c0_10], %11 {strides = array<i32>} : memref<1x128xf32, #tpu.memory_space<vmem>>, vector<1x128xf32>,
    %c0_11 = arith.constant 0 : index
    %c0_12 = arith.constant 0 : index
    %13 = vector.load %arg5[%c0_11, %c0_12] : memref<1x128xf32, #tpu.memory_space<vmem>>, vector<1x128xf32>
    %14 = arith.mulf %2, %2 : vector<128x128xf32>
    %cst_13 = arith.constant dense<0.000000e+00> : vector<128xf32>
    %15 = vector.multi_reduction <add>, %14, %cst_13 [0] : vector<128x128xf32> to vector<128xf32>
    %16 = vector.shape_cast %15 : vector<128xf32> to vector<1x128xf32>
    %17 = arith.addf %13, %16 : vector<1x128xf32>
    %c0_14 = arith.constant 0 : index
    %c0_15 = arith.constant 0 : index
    %18 = vector.load %arg5[%c0_14, %c0_15] : memref<1x128xf32, #tpu.memory_space<vmem>>, vector<1x128xf32>
    tpu.vector_store %arg5[%c0_14, %c0_15], %17 {strides = array<i32>} : memref<1x128xf32, #tpu.memory_space<vmem>>, vector<1x128xf32>,
    return
  }
  func.func @transform_0(%arg0: i32) -> (i32, i32) {
    %c0_i32 = arith.constant 0 : i32
    %c0_i32_0 = arith.constant 0 : i32
    return %arg0, %c0_i32 : i32, i32
  }
  func.func @transform_1(%arg0: i32) -> (i32, i32) {
    %c0_i32 = arith.constant 0 : i32
    %c0_i32_0 = arith.constant 0 : i32
    %c0_i32_1 = arith.constant 0 : i32
    return %c0_i32, %c0_i32_0 : i32, i32
  }
  func.func @transform_2(%arg0: i32) -> (i32, i32) {
    %c0_i32 = arith.constant 0 : i32
    %c0_i32_0 = arith.constant 0 : i32
    return %arg0, %c0_i32 : i32, i32
  }
  func.func @transform_3(%arg0: i32) -> (i32, i32) {
    %c0_i32 = arith.constant 0 : i32
    %c0_i32_0 = arith.constant 0 : i32
    %c0_i32_1 = arith.constant 0 : i32
    return %c0_i32, %c0_i32_0 : i32, i32
  }
  func.func @transform_4(%arg0: i32) -> (i32, i32) {
    %c0_i32 = arith.constant 0 : i32
    %c0_i32_0 = arith.constant 0 : i32
    %c0_i32_1 = arith.constant 0 : i32
    return %c0_i32, %c0_i32_0 : i32, i32
  }
}

</mosaic_0001>

<llo_original>
// kernel: tpu_custom_call.1
$region0: #{tpu_custom_call.1}
  #allocation0 [shape = 'u32[]', space=smem, size = 0x4, offset = 0x4, fixed_abs, tag = 'smem constant byte address 0x4 - core index']
  #allocation1 [shape = 'u32[144,128]{1,0:T(1,128)}', space=vmem, size = 0x12000, scoped, tag = 'internal scratch']
  %s0 = inlined_call_operand.hbm [shape: bf16[128,128], index: 0, kind: input, shape index: {}]
  %s1 = inlined_call_operand.hbm [shape: bf16[128,128], index: 1, kind: input, shape index: {}]
  %s2 = inlined_call_operand.hbm [shape: bf16[128,128], index: 2, kind: output, shape index: {0}]
  %s3 = inlined_call_operand.hbm [shape: f32[1,128], index: 3, kind: output, shape index: {1}]
  %s4 = inlined_call_operand.hbm [shape: f32[1,128], index: 4, kind: output, shape index: {2}]
  %5 = xla_tuple %s2, %s3, %s4
  %s6 = sld [smem:[#allocation0]]
  $region46: #{tpu_custom_call.1} parent=0
    _
  %s8 = ssub.s32 1, %s6
  %s9 = scalar_select 0, %s8, %s6
  $region1: #{tpu_custom_call.1} parent=0
    #allocation2 [shape = 'u8[32768]{0}', space=vmem, size = 0x8000, scoped, tag = 'input window, operand 0, single buffered']
    #allocation3 [shape = 's32[1]{0}', space=sflag, size = 0x4, scoped, tag = 'scoped memory for tpu_custom_call.1']
    #allocation4 [shape = 's32[1]{0}', space=sflag, size = 0x4, scoped, tag = 'scoped memory for tpu_custom_call.1']
    #allocation5 [shape = 'u8[32768]{0}', space=vmem, size = 0x8000, scoped, tag = 'input window, operand 1, single buffered']
    #allocation6 [shape = 's32[1]{0}', space=sflag, size = 0x4, scoped, tag = 'scoped memory for tpu_custom_call.1']
    #allocation7 [shape = 'u8[32768]{0}', space=vmem, size = 0x8000, scoped, tag = 'output window, operand 0, single buffered']
    #allocation8 [shape = 'u8[512]{0}', space=vmem, size = 0x400, scoped, tag = 'output window, operand 1, single buffered']
    #allocation9 [shape = 's32[1]{0}', space=sflag, size = 0x4, scoped, tag = 'scoped memory for tpu_custom_call.1']
    #allocation10 [shape = 'u8[512]{0}', space=vmem, size = 0x400, scoped, tag = 'output window, operand 2, single buffered']
    %10 = vsyncpa [#allocation3], 0
    %11 = vsyncpa [#allocation6], 0
    %12 = vsyncpa [#allocation4], 0
    %13 = vsyncpa [#allocation9], 0
    // Predicated region
    $region2: #{tpu_custom_call.1} parent=1 // pred_check
      _
    $region3: #{tpu_custom_call.1} parent=1 // pred_check_branch
      %15 = sbr.rel (0) target = $region5
    $region4: #{tpu_custom_call.1} parent=1 // pred_region
      %s17 = ssub.s32 1024, 1024
      %18 = vsyncadd [#allocation3], %s17
      %s19 = sshll.u32 [#allocation2], 4
      %s20 = int_to_ptr.vmem [resolvable:$true] %s19
      %25 = dma.hbm_to_vmem [thread:$0]  %s0, 1024, %s20, [#allocation3], 64, 64, 4
    $region5: #{tpu_custom_call.1} parent=1 // pred_fallthru
      _
    // Predicated region
    $region6: #{tpu_custom_call.1} parent=1 // pred_check
      _
    $region7: #{tpu_custom_call.1} parent=1 // pred_check_branch
      %27 = sbr.rel (0) target = $region9
    $region8: #{tpu_custom_call.1} parent=1 // pred_region
      %s29 = ssub.s32 1024, 1024
      %30 = vsyncadd [#allocation6], %s29
      %s31 = sshll.u32 [#allocation5], 4
      %s32 = int_to_ptr.vmem [resolvable:$true] %s31
      %37 = dma.hbm_to_vmem [thread:$0]  %s1, 1024, %s32, [#allocation6], 64, 64, 4
    $region9: #{tpu_custom_call.1} parent=1 // pred_fallthru
      _
    // Predicated region
    $region10: #{tpu_custom_call.1} parent=1 // pred_check
      _
    $region11: #{tpu_custom_call.1} parent=1 // pred_check_branch
      %39 = sbr.rel (0) target = $region13
    $region12: #{tpu_custom_call.1} parent=1 // pred_region
      %40 = dma.done [#allocation3], 1024
    $region13: #{tpu_custom_call.1} parent=1 // pred_fallthru
      _
    // Predicated region
    $region14: #{tpu_custom_call.1} parent=1 // pred_check
      _
    $region15: #{tpu_custom_call.1} parent=1 // pred_check_branch
      %42 = sbr.rel (0) target = $region17
    $region16: #{tpu_custom_call.1} parent=1 // pred_region
      %43 = dma.done [#allocation6], 1024
    $region17: #{tpu_custom_call.1} parent=1 // pred_fallthru
      _
    %v45 = vld [vmem:[#allocation2] sm:$0xf]
    %v46 = vld [vmem:[#allocation2 + $0x4] sm:$0xf]
    %v47 = vld [vmem:[#allocation2 + $0x8] sm:$0xf]
    %v48 = vld [vmem:[#allocation2 + $0xc] sm:$0xf]
    %v49 = vld [vmem:[#allocation2 + $0x10] sm:$0xf]
    %v50 = vld [vmem:[#allocation2 + $0x14] sm:$0xf]
    %v51 = vld [vmem:[#allocation2 + $0x18] sm:$0xf]
    %v52 = vld [vmem:[#allocation2 + $0x1c] sm:$0xf]
    %v53 = vld [vmem:[#allocation2 + $0x20] sm:$0xf]
    %v54 = vld [vmem:[#allocation2 + $0x24] sm:$0xf]
    %v55 = vld [vmem:[#allocation2 + $0x28] sm:$0xf]
    %v56 = vld [vmem:[#allocation2 + $0x2c] sm:$0xf]
    %v57 = vld [vmem:[#allocation2 + $0x30] sm:$0xf]
    %v58 = vld [vmem:[#allocation2 + $0x34] sm:$0xf]
    %v59 = vld [vmem:[#allocation2 + $0x38] sm:$0xf]
    %v60 = vld [vmem:[#allocation2 + $0x3c] sm:$0xf]
    %v61 = vld [vmem:[#allocation5] sm:$0xf]
    %v62 = vld [vmem:[#allocation5 + $0x4] sm:$0xf]
    %v63 = vld [vmem:[#allocation5 + $0x8] sm:$0xf]
    %v64 = vld [vmem:[#allocation5 + $0xc] sm:$0xf]
    %v65 = vld [vmem:[#allocation5 + $0x10] sm:$0xf]
    %v66 = vld [vmem:[#allocation5 + $0x14] sm:$0xf]
    %v67 = vld [vmem:[#allocation5 + $0x18] sm:$0xf]
    %v68 = vld [vmem:[#allocation5 + $0x1c] sm:$0xf]
    %v69 = vld [vmem:[#allocation5 + $0x20] sm:$0xf]
    %v70 = vld [vmem:[#allocation5 + $0x24] sm:$0xf]
    %v71 = vld [vmem:[#allocation5 + $0x28] sm:$0xf]
    %v72 = vld [vmem:[#allocation5 + $0x2c] sm:$0xf]
    %v73 = vld [vmem:[#allocation5 + $0x30] sm:$0xf]
    %v74 = vld [vmem:[#allocation5 + $0x34] sm:$0xf]
    %v75 = vld [vmem:[#allocation5 + $0x38] sm:$0xf]
    %v76 = vld [vmem:[#allocation5 + $0x3c] sm:$0xf]
    %v93 = vunpack.c.l.b16 %v45
    %v94 = vunpack.c.l.b16 %v46
    %v95 = vunpack.c.l.b16 %v47
    %v96 = vunpack.c.l.b16 %v48
    %v97 = vunpack.c.l.b16 %v49
    %v98 = vunpack.c.l.b16 %v50
    %v99 = vunpack.c.l.b16 %v51
    %v100 = vunpack.c.l.b16 %v52
    %v101 = vunpack.c.l.b16 %v53
    %v102 = vunpack.c.l.b16 %v54
    %v103 = vunpack.c.l.b16 %v55
    %v104 = vunpack.c.l.b16 %v56
    %v105 = vunpack.c.l.b16 %v57
    %v106 = vunpack.c.l.b16 %v58
    %v107 = vunpack.c.l.b16 %v59
    %v108 = vunpack.c.l.b16 %v60
    %v109 = vpack.c.b16 %v94, %v93
    %v110 = vpack.c.b16 %v96, %v95
    %v111 = vpack.c.b16 %v98, %v97
    %v112 = vpack.c.b16 %v100, %v99
    %v113 = vpack.c.b16 %v102, %v101
    %v114 = vpack.c.b16 %v104, %v103
    %v115 = vpack.c.b16 %v106, %v105
    %v116 = vpack.c.b16 %v108, %v107
    %v141 = vunpack.c.l.b16 %v61
    %v142 = vunpack.c.l.b16 %v62
    %v143 = vunpack.c.l.b16 %v63
    %v144 = vunpack.c.l.b16 %v64
    %v145 = vunpack.c.l.b16 %v65
    %v146 = vunpack.c.l.b16 %v66
    %v147 = vunpack.c.l.b16 %v67
    %v148 = vunpack.c.l.b16 %v68
    %v149 = vunpack.c.l.b16 %v69
    %v150 = vunpack.c.l.b16 %v70
    %v151 = vunpack.c.l.b16 %v71
    %v152 = vunpack.c.l.b16 %v72
    %v153 = vunpack.c.l.b16 %v73
    %v154 = vunpack.c.l.b16 %v74
    %v155 = vunpack.c.l.b16 %v75
    %v156 = vunpack.c.l.b16 %v76
    %v157 = vpack.c.b16 %v142, %v141
    %v158 = vpack.c.b16 %v144, %v143
    %v159 = vpack.c.b16 %v146, %v145
    %v160 = vpack.c.b16 %v148, %v147
    %v161 = vpack.c.b16 %v150, %v149
    %v162 = vpack.c.b16 %v152, %v151
    %v163 = vpack.c.b16 %v154, %v153
    %v164 = vpack.c.b16 %v156, %v155
    %173 = vmatprep.subr.bf16.mxu0 0
    %174 = vmatpush1.bf16.msra.mxu0 %v164
    %175 = vmatprep.subr.bf16.mxu0 0
    %176 = vmatpush1.bf16.msra.mxu0 %v163
    %177 = vmatprep.subr.bf16.mxu0 0
    %178 = vmatpush1.bf16.msra.mxu0 %v162
    %179 = vmatprep.subr.bf16.mxu0 0
    %180 = vmatpush1.bf16.msra.mxu0 %v161
    %181 = vmatprep.subr.bf16.mxu0 0
    %182 = vmatpush1.bf16.msra.mxu0 %v160
    %183 = vmatprep.subr.bf16.mxu0 0
    %184 = vmatpush1.bf16.msra.mxu0 %v159
    %185 = vmatprep.subr.bf16.mxu0 0
    %186 = vmatpush1.bf16.msra.mxu0 %v158
    %187 = vmatprep.subr.bf16.mxu0 0
    %188 = vmatpush1.bf16.msra.mxu0 %v157
    %189 = vmatprep.subr.bf16.mxu0 0
    %190 = vmatpush2.bf16.msra.mxu0 0
    %191 = vmatprep.subr.bf16.mxu0 0
    %192 = vmatpush2.bf16.msra.mxu0 0
    %193 = vmatprep.subr.bf16.mxu0 0
    %194 = vmatpush2.bf16.msra.mxu0 0
    %195 = vmatprep.subr.bf16.mxu0 0
    %196 = vmatpush2.bf16.msra.mxu0 0
    %197 = vmatprep.subr.bf16.mxu0 0
    %198 = vmatpush2.bf16.msra.mxu0 0
    %199 = vmatprep.subr.bf16.mxu0 0
    %200 = vmatpush2.bf16.msra.mxu0 0
    %201 = vmatprep.subr.bf16.mxu0 0
    %202 = vmatpush2.bf16.msra.mxu0 0
    %203 = vmatprep.subr.bf16.mxu0 0
    %204 = vmatpush2.bf16.msra.mxu0 0
    %205 = vmatprep.mubr.bf16.mxu0 0
    %206 = vmatmul.mubr.bf16.gmra.mxu0 %v109
    %v207 = vpop.f32.mrf.mxu0
    %v208 = vadd.f32 0.0, %v207
    %v209 = vpop.f32.mrf.mxu0
    %v210 = vpop.f32.mrf.mxu0
    %v211 = vadd.f32 0.0, %v210
    %v212 = vpop.f32.mrf.mxu0
    %213 = vmatprep.mubr.bf16.mxu0 0
    %214 = vmatmul.mubr.bf16.gmra.mxu0 %v110
    %v215 = vpop.f32.mrf.mxu0
    %v216 = vadd.f32 0.0, %v215
    %v217 = vpop.f32.mrf.mxu0
    %v218 = vpop.f32.mrf.mxu0
    %v219 = vadd.f32 0.0, %v218
    %v220 = vpop.f32.mrf.mxu0
    %221 = vmatprep.mubr.bf16.mxu0 0
    %222 = vmatmul.mubr.bf16.gmra.mxu0 %v111
    %v223 = vpop.f32.mrf.mxu0
    %v224 = vadd.f32 0.0, %v223
    %v225 = vpop.f32.mrf.mxu0
    %v226 = vpop.f32.mrf.mxu0
    %v227 = vadd.f32 0.0, %v226
    %v228 = vpop.f32.mrf.mxu0
    %229 = vmatprep.mubr.bf16.mxu0 0
    %230 = vmatmul.mubr.bf16.gmra.mxu0 %v112
    %v231 = vpop.f32.mrf.mxu0
    %v232 = vadd.f32 0.0, %v231
    %v233 = vpop.f32.mrf.mxu0
    %v234 = vpop.f32.mrf.mxu0
    %v235 = vadd.f32 0.0, %v234
    %v236 = vpop.f32.mrf.mxu0
    %237 = vmatprep.mubr.bf16.mxu0 0
    %238 = vmatmul.mubr.bf16.gmra.mxu0 %v113
    %v239 = vpop.f32.mrf.mxu0
    %v240 = vadd.f32 0.0, %v239
    %v241 = vpop.f32.mrf.mxu0
    %v242 = vpop.f32.mrf.mxu0
    %v243 = vadd.f32 0.0, %v242
    %v244 = vpop.f32.mrf.mxu0
    %245 = vmatprep.mubr.bf16.mxu0 0
    %246 = vmatmul.mubr.bf16.gmra.mxu0 %v114
    %v247 = vpop.f32.mrf.mxu0
    %v248 = vadd.f32 0.0, %v247
    %v249 = vpop.f32.mrf.mxu0
    %v250 = vpop.f32.mrf.mxu0
    %v251 = vadd.f32 0.0, %v250
    %v252 = vpop.f32.mrf.mxu0
    %253 = vmatprep.mubr.bf16.mxu0 0
    %254 = vmatmul.mubr.bf16.gmra.mxu0 %v115
    %v255 = vpop.f32.mrf.mxu0
    %v256 = vadd.f32 0.0, %v255
    %v257 = vpop.f32.mrf.mxu0
    %v258 = vpop.f32.mrf.mxu0
    %v259 = vadd.f32 0.0, %v258
    %v260 = vpop.f32.mrf.mxu0
    %261 = vmatprep.mubr.bf16.mxu0 0
    %262 = vmatmul.mubr.bf16.gmra.mxu0 %v116
    %v263 = vpop.f32.mrf.mxu0
    %v264 = vadd.f32 0.0, %v263
    %v265 = vpop.f32.mrf.mxu0
    %v266 = vpop.f32.mrf.mxu0
    %v267 = vadd.f32 0.0, %v266
    %v268 = vpop.f32.mrf.mxu0
    %269 = vdwg.mxu0
    %v270 = vpack.c.bf16 %v211, %v208
    %v271 = vpack.c.bf16 %v219, %v216
    %v272 = vpack.c.bf16 %v227, %v224
    %v273 = vpack.c.bf16 %v235, %v232
    %v274 = vpack.c.bf16 %v243, %v240
    %v275 = vpack.c.bf16 %v251, %v248
    %v276 = vpack.c.bf16 %v259, %v256
    %v277 = vpack.c.bf16 %v267, %v264
    %v286 = vunpack.c.l.b16 %v270
    %v287 = vunpack.c.h.b16 %v270
    %v288 = vunpack.c.l.b16 %v271
    %v289 = vunpack.c.h.b16 %v271
    %v290 = vunpack.c.l.b16 %v272
    %v291 = vunpack.c.h.b16 %v272
    %v292 = vunpack.c.l.b16 %v273
    %v293 = vunpack.c.h.b16 %v273
    %v294 = vunpack.c.l.b16 %v274
    %v295 = vunpack.c.h.b16 %v274
    %v296 = vunpack.c.l.b16 %v275
    %v297 = vunpack.c.h.b16 %v275
    %v298 = vunpack.c.l.b16 %v276
    %v299 = vunpack.c.h.b16 %v276
    %v300 = vunpack.c.l.b16 %v277
    %v301 = vunpack.c.h.b16 %v277
    %v302 = vpack.c.b16 %v286, %v286
    %v303 = vpack.c.b16 %v287, %v287
    %v304 = vpack.c.b16 %v288, %v288
    %v305 = vpack.c.b16 %v289, %v289
    %v306 = vpack.c.b16 %v290, %v290
    %v307 = vpack.c.b16 %v291, %v291
    %v308 = vpack.c.b16 %v292, %v292
    %v309 = vpack.c.b16 %v293, %v293
    %v310 = vpack.c.b16 %v294, %v294
    %v311 = vpack.c.b16 %v295, %v295
    %v312 = vpack.c.b16 %v296, %v296
    %v313 = vpack.c.b16 %v297, %v297
    %v314 = vpack.c.b16 %v298, %v298
    %v315 = vpack.c.b16 %v299, %v299
    %v316 = vpack.c.b16 %v300, %v300
    %v317 = vpack.c.b16 %v301, %v301
    %334 = vst [vmem:[#allocation7] sm:$0xf] %v302
    %335 = vst [vmem:[#allocation7 + $0x4] sm:$0xf] %v303
    %336 = vst [vmem:[#allocation7 + $0x8] sm:$0xf] %v304
    %337 = vst [vmem:[#allocation7 + $0xc] sm:$0xf] %v305
    %338 = vst [vmem:[#allocation7 + $0x10] sm:$0xf] %v306
    %339 = vst [vmem:[#allocation7 + $0x14] sm:$0xf] %v307
    %340 = vst [vmem:[#allocation7 + $0x18] sm:$0xf] %v308
    %341 = vst [vmem:[#allocation7 + $0x1c] sm:$0xf] %v309
    %342 = vst [vmem:[#allocation7 + $0x20] sm:$0xf] %v310
    %343 = vst [vmem:[#allocation7 + $0x24] sm:$0xf] %v311
    %344 = vst [vmem:[#allocation7 + $0x28] sm:$0xf] %v312
    %345 = vst [vmem:[#allocation7 + $0x2c] sm:$0xf] %v313
    %346 = vst [vmem:[#allocation7 + $0x30] sm:$0xf] %v314
    %347 = vst [vmem:[#allocation7 + $0x34] sm:$0xf] %v315
    %348 = vst [vmem:[#allocation7 + $0x38] sm:$0xf] %v316
    %349 = vst [vmem:[#allocation7 + $0x3c] sm:$0xf] %v317
    %p350 = scmp.eq.s32.totalorder 0, 0
    // Predicated region
    $region18: #{tpu_custom_call.1} parent=1 // pred_check
      %p351 = pneg %p350
    $region19: #{tpu_custom_call.1} parent=1 // pred_check_branch
      %353 = sbr.rel (%p351) target = $region21
    $region20: #{tpu_custom_call.1} parent=1 // pred_region
      %354 = vst [vmem:[#allocation8] sm:$0x1] 0.0
      %355 = vst [vmem:[#allocation10] sm:$0x1] 0.0
    $region21: #{tpu_custom_call.1} parent=1 // pred_fallthru
      _
    %v356 = vld [vmem:[#allocation8] sm:$0x1]
    %v357 = vadd.f32 %v208, %v211
    %v358 = vadd.f32 %v357, %v216
    %v359 = vadd.f32 %v358, %v219
    %v360 = vadd.f32 %v359, %v224
    %v361 = vadd.f32 %v360, %v227
    %v362 = vadd.f32 %v361, %v232
    %v363 = vadd.f32 %v362, %v235
    %v364 = vadd.f32 %v363, %v240
    %v365 = vadd.f32 %v364, %v243
    %v366 = vadd.f32 %v365, %v248
    %v367 = vadd.f32 %v366, %v251
    %v368 = vadd.f32 %v367, %v256
    %v369 = vadd.f32 %v368, %v259
    %v370 = vadd.f32 %v369, %v264
    %v371 = vadd.f32 %v370, %v267
    %v372 = vrot.slane %v371, 4
    %v373 = vadd.f32 %v371, %v372
    %v374 = vrot.slane %v373, 2
    %v375 = vadd.f32 %v373, %v374
    %v376 = vrot.slane %v375, 1
    %v377 = vadd.f32 %v375, %v376
    %v378 = vadd.f32 %v356, %v377
    %379 = vst [vmem:[#allocation8] sm:$0x1] %v378
    %v380 = vld [vmem:[#allocation10] sm:$0x1]
    %v381 = vmul.f32 %v208, %v208
    %v382 = vmul.f32 %v211, %v211
    %v383 = vmul.f32 %v216, %v216
    %v384 = vmul.f32 %v219, %v219
    %v385 = vmul.f32 %v224, %v224
    %v386 = vmul.f32 %v227, %v227
    %v387 = vmul.f32 %v232, %v232
    %v388 = vmul.f32 %v235, %v235
    %v389 = vmul.f32 %v240, %v240
    %v390 = vmul.f32 %v243, %v243
    %v391 = vmul.f32 %v248, %v248
    %v392 = vmul.f32 %v251, %v251
    %v393 = vmul.f32 %v256, %v256
    %v394 = vmul.f32 %v259, %v259
    %v395 = vmul.f32 %v264, %v264
    %v396 = vmul.f32 %v267, %v267
    %v397 = vadd.f32 %v381, %v382
    %v398 = vadd.f32 %v397, %v383
    %v399 = vadd.f32 %v398, %v384
    %v400 = vadd.f32 %v399, %v385
    %v401 = vadd.f32 %v400, %v386
    %v402 = vadd.f32 %v401, %v387
    %v403 = vadd.f32 %v402, %v388
    %v404 = vadd.f32 %v403, %v389
    %v405 = vadd.f32 %v404, %v390
    %v406 = vadd.f32 %v405, %v391
    %v407 = vadd.f32 %v406, %v392
    %v408 = vadd.f32 %v407, %v393
    %v409 = vadd.f32 %v408, %v394
    %v410 = vadd.f32 %v409, %v395
    %v411 = vadd.f32 %v410, %v396
    %v412 = vrot.slane %v411, 4
    %v413 = vadd.f32 %v411, %v412
    %v414 = vrot.slane %v413, 2
    %v415 = vadd.f32 %v413, %v414
    %v416 = vrot.slane %v415, 1
    %v417 = vadd.f32 %v415, %v416
    %v418 = vadd.f32 %v380, %v417
    %419 = vst [vmem:[#allocation10] sm:$0x1] %v418
    // Predicated region
    $region22: #{tpu_custom_call.1} parent=1 // pred_check
      _
    $region23: #{tpu_custom_call.1} parent=1 // pred_check_branch
      %421 = sbr.rel (0) target = $region25
    $region24: #{tpu_custom_call.1} parent=1 // pred_region
      %s423 = ssub.s32 1024, 1024
      %424 = vsyncadd [#allocation4], %s423
      %s425 = sshll.u32 [#allocation7], 4
      %s426 = int_to_ptr.vmem [resolvable:$true] %s425
      %431 = dma.vmem_to_hbm [thread:$0]  %s426, 1024, %s2, [#allocation4], 64, 64, 4
    $region25: #{tpu_custom_call.1} parent=1 // pred_fallthru
      _
    // Predicated region
    $region26: #{tpu_custom_call.1} parent=1 // pred_check
      _
    $region27: #{tpu_custom_call.1} parent=1 // pred_check_branch
      %433 = sbr.rel (0) target = $region29
    $region28: #{tpu_custom_call.1} parent=1 // pred_region
      %s435 = ssub.s32 16, 16
      %436 = vsyncadd [#allocation9], %s435
      %s438 = sshll.u32 [#allocation8], 4
      %s439 = int_to_ptr.vmem [resolvable:$true] %s438
      %441 = dma.vmem_to_hbm [thread:$0]  %s439, 16, %s3, [#allocation9]
    $region29: #{tpu_custom_call.1} parent=1 // pred_fallthru
      _
    // Predicated region
    $region30: #{tpu_custom_call.1} parent=1 // pred_check
      _
    $region31: #{tpu_custom_call.1} parent=1 // pred_check_branch
      %443 = sbr.rel (0) target = $region33
    $region32: #{tpu_custom_call.1} parent=1 // pred_region
      %s445 = ssub.s32 16, 16
      %446 = vsyncadd [#allocation9], %s445
      %s448 = sshll.u32 [#allocation10], 4
      %s449 = int_to_ptr.vmem [resolvable:$true] %s448
      %451 = dma.vmem_to_hbm [thread:$0]  %s449, 16, %s4, [#allocation9]
    $region33: #{tpu_custom_call.1} parent=1 // pred_fallthru
      _
    // Predicated region
    $region34: #{tpu_custom_call.1} parent=1 // pred_check
      _
    $region35: #{tpu_custom_call.1} parent=1 // pred_check_branch
      %453 = sbr.rel (0) target = $region37
    $region36: #{tpu_custom_call.1} parent=1 // pred_region
      %454 = dma.done [#allocation4], 1024
    $region37: #{tpu_custom_call.1} parent=1 // pred_fallthru
      _
    // Predicated region
    $region38: #{tpu_custom_call.1} parent=1 // pred_check
      _
    $region39: #{tpu_custom_call.1} parent=1 // pred_check_branch
      %456 = sbr.rel (0) target = $region41
    $region40: #{tpu_custom_call.1} parent=1 // pred_region
      %457 = dma.done [#allocation9], 16
    $region41: #{tpu_custom_call.1} parent=1 // pred_fallthru
      _
    // Predicated region
    $region42: #{tpu_custom_call.1} parent=1 // pred_check
      _
    $region43: #{tpu_custom_call.1} parent=1 // pred_check_branch
      %459 = sbr.rel (0) target = $region45
    $region44: #{tpu_custom_call.1} parent=1 // pred_region
      %460 = dma.done [#allocation9], 16
    $region45: #{tpu_custom_call.1} parent=1 // pred_fallthru
      _
    %461 = vsyncpa [#allocation3], 1
    %462 = vsyncpa [#allocation6], 1
    %463 = vsyncpa [#allocation4], 1
    %464 = vsyncpa [#allocation9], 1

</llo_original>
